<compile_context>
chip_gen: v5e
topology: v5e:2x2
jax: 0.10.0
libtpu: 0.0.40
codegen_flags: <defaults>
</compile_context>

<pallas_src>
import functools
import math

import jax
import jax.numpy as jnp
from jax.experimental import pallas as pl
from jax.experimental.pallas import tpu as pltpu


# ----------------------------- Pallas kernel --------------------------------

def _fused_mha_kernel(x_ref, w_in_ref, b_in_ref, w_out_ref, b_out_ref, *rest,
                      num_heads, compute_dtype):
    """Nb batch elements per grid step; all heads + both projections fused.

    x_ref:    (Nb, L, E)   input block (compute_dtype, e.g. bf16)
    w_in_ref: (E, 3E)      pre-transposed fused QKV weight (Q block pre-scaled)
    b_in_ref: (1, 3E)      f32 bias (Q block pre-scaled)
    w_out_ref:(E, E)       pre-transposed output projection weight
    b_out_ref:(1, E)       f32 bias
    rest:     (bias_ref, o_ref) when a key-padding mask is used, else (o_ref,)
              bias_ref: (Nb, 1, L) f32 additive key bias (0 or -1e30)
    o_ref:    (Nb, L, E)   output block (lane-dense: last dim = full E)
    """
    if len(rest) == 2:
        bias_ref, o_ref = rest
    else:
        (o_ref,) = rest
        bias_ref = None

    Nb, L, E = x_ref.shape
    H = num_heads
    Dh = E // H

    # Fused QKV projection on the MXU over the flattened (Nb*L, E) slab.
    x = x_ref[...].reshape(Nb * L, E)
    qkv = jnp.dot(x, w_in_ref[...],
                  preferred_element_type=jnp.float32) + b_in_ref[...]   # (Nb*L, 3E) f32

    q = qkv[:, 0 * E:1 * E]          # 1/sqrt(Dh) already folded into W_in/b_in
    k = qkv[:, 1 * E:2 * E]
    v = qkv[:, 2 * E:3 * E]

    def to_heads(t):
        t = t.reshape(Nb, L, H, Dh).astype(compute_dtype)
        return jnp.transpose(t, (0, 2, 1, 3)).reshape(Nb * H, L, Dh)

    qh = to_heads(q)                                     # (Nb*H, L, Dh)
    kh = to_heads(k)
    vh = to_heads(v)

    # Batched q @ k^T (no K transpose materialized), f32 scores.
    s = jnp.einsum("bqd,bkd->bqk", qh, kh,
                   preferred_element_type=jnp.float32)   # (Nb*H, L, L)

    if bias_ref is not None:
        bias = bias_ref[...]                             # (Nb, 1, L) f32
        bias = jnp.broadcast_to(bias[:, None, :, :], (Nb, H, 1, L))
        s = s + bias.reshape(Nb * H, 1, L)

    # Softmax (f32), divide routed to the EUP via approximate reciprocal.
    m = jnp.max(s, axis=-1, keepdims=True)
    p = jnp.exp(s - m)
    denom = jnp.sum(p, axis=-1, keepdims=True)
    p = p * pl.reciprocal(denom, approx=True)

    # P @ V, then ONE lane-dense (Nb*L, E) @ (E, E) output projection.
    o = jnp.einsum("bqk,bkd->bqd", p.astype(compute_dtype), vh,
                   preferred_element_type=jnp.float32)   # (Nb*H, L, Dh)
    o = o.reshape(Nb, H, L, Dh)
    o = jnp.transpose(o, (0, 2, 1, 3)).reshape(Nb * L, E).astype(compute_dtype)

    out = jnp.dot(o, w_out_ref[...],
                  preferred_element_type=jnp.float32) + b_out_ref[...]  # (Nb*L, E)
    o_ref[...] = out.reshape(Nb, L, E).astype(o_ref.dtype)


# ------------------------------ Wrapper --------------------------------------

def prepare_params(params, num_heads, compute_dtype=jnp.bfloat16):
    """One-time weight layout prep (transpose / scale-fold / bf16 cast)."""
    w_in = jnp.asarray(params["in_proj_weight"], jnp.float32)    # (3E, E)
    b_in = jnp.asarray(params["in_proj_bias"], jnp.float32)      # (3E,)
    w_out = jnp.asarray(params["out_proj_weight"], jnp.float32)  # (E, E)
    b_out = jnp.asarray(params["out_proj_bias"], jnp.float32)    # (E,)

    E = w_out.shape[0]
    assert E % num_heads == 0
    scale = 1.0 / math.sqrt(E // num_heads)

    # Fold the 1/sqrt(Dh) q-scaling into the Q block of the fused projection.
    w_in_scaled = jnp.concatenate([w_in[:E] * scale, w_in[E:]], axis=0)
    b_in_scaled = jnp.concatenate([b_in[:E] * scale, b_in[E:]], axis=0)

    return {
        "w_in_t": w_in_scaled.T.astype(compute_dtype),   # (E, 3E) bf16
        "b_in": b_in_scaled[None, :],                     # (1, 3E) f32
        "w_out_t": w_out.T.astype(compute_dtype),         # (E, E)  bf16
        "b_out": b_out[None, :],                          # (1, E)  f32
    }


def _pick_batch_block(n):
    """Largest divisor of n that still leaves >= 2 grid steps (megacore)."""
    if n <= 1:
        return 1
    for d in range(n // 2, 0, -1):
        if n % d == 0:
            return d
    return 1


def exploration_head_forward(x, prepared, num_heads, mask=None, batch_block=None):
    """x: (L, N, E); mask: optional (N, L) bool, True = valid token."""
    L, N, E = x.shape
    H = num_heads
    Dh = E // H

    w_in_t, b_in = prepared["w_in_t"], prepared["b_in"]
    w_out_t, b_out = prepared["w_out_t"], prepared["b_out"]
    compute_dtype = w_in_t.dtype

    Nb = batch_block if batch_block is not None else _pick_batch_block(N)
    assert N % Nb == 0, "batch_block must divide the batch size"
    grid = (N // Nb,)

    # One cheap layout change so each batch element is a contiguous (L, E)
    # slab; fuse the bf16 cast into it (halves the input DMA bytes).
    xb = jnp.transpose(x, (1, 0, 2)).astype(compute_dtype)   # (N, L, E)

    in_specs = [
        pl.BlockSpec((Nb, L, E), lambda n: (n, 0, 0)),        # x (per batch block)
        pl.BlockSpec((E, 3 * E), lambda n: (0, 0)),           # W_in^T (resident)
        pl.BlockSpec((1, 3 * E), lambda n: (0, 0)),           # b_in
        pl.BlockSpec((E, E), lambda n: (0, 0)),               # W_out^T (resident)
        pl.BlockSpec((1, E), lambda n: (0, 0)),               # b_out
    ]
    args = [xb, w_in_t, b_in, w_out_t, b_out]

    bias_bytes = 0
    if mask is not None:
        # key_padding_mask = ~mask (PyTorch module inverts); True => ignore key.
        kpm = jnp.logical_not(mask.astype(bool))              # (N, L)
        bias = jnp.where(kpm, -1e30, 0.0).astype(jnp.float32)[:, None, :]  # (N,1,L)
        in_specs.append(pl.BlockSpec((Nb, 1, L), lambda n: (n, 0, 0)))
        args.append(bias)
        bias_bytes = bias.size * 4

    itemsize = jnp.dtype(compute_dtype).itemsize
    flops = (2 * N * L * E * 3 * E            # QKV projection
             + 4 * N * H * L * L * Dh         # QK^T + PV
             + 2 * N * L * E * E)             # output projection
    bytes_accessed = (N * L * E * (itemsize + jnp.dtype(x.dtype).itemsize)
                      + (E * 3 * E + E * E) * itemsize
                      + (3 * E + E) * 4
                      + bias_bytes)
    cost = pl.CostEstimate(flops=int(flops),
                           transcendentals=int(N * H * L * L),
                           bytes_accessed=int(bytes_accessed))

    kern = functools.partial(_fused_mha_kernel,
                             num_heads=num_heads, compute_dtype=compute_dtype)
    out = pl.pallas_call(
        kern,
        out_shape=jax.ShapeDtypeStruct((N, L, E), x.dtype),
        grid=grid,
        in_specs=in_specs,
        out_specs=pl.BlockSpec((Nb, L, E), lambda n: (n, 0, 0)),
        compiler_params=pltpu.CompilerParams(
            dimension_semantics=("parallel",),
            vmem_limit_bytes=64 * 1024 * 1024),
        cost_estimate=cost,
    )(*args)

    return jnp.transpose(out, (1, 0, 2))                      # (L, N, E)


# --------------------------- Reference (pure JAX) ----------------------------

def _reference_forward(x, params, num_heads, mask=None):
    L, N, E = x.shape
    Dh = E // num_heads
    w_in, b_in = params["in_proj_weight"], params["in_proj_bias"]
    w_out, b_out = params["out_proj_weight"], params["out_proj_bias"]
    qkv = x.reshape(L * N, E) @ w_in.T + b_in
    q, k, v = jnp.split(qkv, 3, axis=-1)

    def heads(t):
        return jnp.transpose(t.reshape(L, N, num_heads, Dh), (1, 2, 0, 3))

    qh, kh, vh = heads(q), heads(k), heads(v)            # (N, H, L, Dh)
    s = jnp.einsum("nhqd,nhkd->nhqk", qh, kh) / math.sqrt(Dh)
    if mask is not None:
        kpm = jnp.logical_not(mask.astype(bool))         # (N, L)
        s = jnp.where(kpm[:, None, None, :], -1e30, s)
    p = jax.nn.softmax(s, axis=-1)
    o = jnp.einsum("nhqk,nhkd->nhqd", p, vh)             # (N, H, L, Dh)
    o = jnp.transpose(o, (2, 0, 1, 3)).reshape(L * N, E)
    return (o @ w_out.T + b_out).reshape(L, N, E)


# ------------------------------- Main -----------------------------------------

def init_params(key, embed_dim):
    k1, k2, k3, k4 = jax.random.split(key, 4)
    limit_in = math.sqrt(6.0 / (embed_dim + 3 * embed_dim))   # xavier_uniform-ish
    limit_out = math.sqrt(6.0 / (embed_dim + embed_dim))
    return {
        "in_proj_weight": jax.random.uniform(
            k1, (3 * embed_dim, embed_dim), jnp.float32, -limit_in, limit_in),
        "in_proj_bias": 0.01 * jax.random.normal(k2, (3 * embed_dim,), jnp.float32),
        "out_proj_weight": jax.random.uniform(
            k3, (embed_dim, embed_dim), jnp.float32, -limit_out, limit_out),
        "out_proj_bias": 0.01 * jax.random.normal(k4, (embed_dim,), jnp.float32),
    }


if __name__ == "__main__":
    L, N, E, H = 8, 2, 32, 4      # seq, batch, embed_dim, num_heads
    key = jax.random.PRNGKey(0)
    kx, kp = jax.random.split(key)
    x = jax.random.normal(kx, (L, N, E), jnp.float32)
    params = init_params(kp, E)
    prepared = prepare_params(params, H)

    # Unmasked path (no bias input is DMA'd at all).
    out = jax.block_until_ready(exploration_head_forward(x, prepared, H, mask=None))
    ref = _reference_forward(x, params, H, mask=None)
    assert out.shape == (L, N, E)
    assert jnp.allclose(out, ref, atol=2e-2, rtol=2e-2), "mismatch vs reference (no mask)"

    # Masked path (every batch element keeps >=1 valid key, so no 0/0 rows).
    mask = jnp.array([[True] * L,
                      [True] * 5 + [False] * (L - 5)], dtype=bool)   # (N, L)
    out_m = jax.block_until_ready(exploration_head_forward(x, prepared, H, mask=mask))
    ref_m = _reference_forward(x, params, H, mask=mask)
    assert jnp.allclose(out_m, ref_m, atol=2e-2, rtol=2e-2), "mismatch vs reference (mask)"

    print("KERNEL_OK")
</pallas_src>

<mosaic_0001>
module attributes {stable_mosaic.version = 11 : i64} {
  func.func @_fused_mha_kernel(%arg0: i32, %arg1: memref<1x8x32xbf16, #tpu.memory_space<vmem>>, %arg2: memref<32x96xbf16, #tpu.memory_space<vmem>>, %arg3: memref<1x96xf32, #tpu.memory_space<vmem>>, %arg4: memref<32x32xbf16, #tpu.memory_space<vmem>>, %arg5: memref<1x32xf32, #tpu.memory_space<vmem>>, %arg6: memref<1x8x32xf32, #tpu.memory_space<vmem>>) attributes {dimension_semantics = [#tpu.dimension_semantics<parallel>], iteration_bounds = array<i64: 2>, scalar_prefetch = 0 : i64, scratch_operands = 0 : i64, tpu.core_type = #tpu.core_type<tc>, window_params = [{transform_indices = @transform_0, window_bounds = array<i64: 1, 8, 32>}, {pipeline_mode = #tpu.pipeline_mode<synchronous>, transform_indices = @transform_1, window_bounds = array<i64: 32, 96>}, {pipeline_mode = #tpu.pipeline_mode<synchronous>, transform_indices = @transform_2, window_bounds = array<i64: 1, 96>}, {pipeline_mode = #tpu.pipeline_mode<synchronous>, transform_indices = @transform_3, window_bounds = array<i64: 32, 32>}, {pipeline_mode = #tpu.pipeline_mode<synchronous>, transform_indices = @transform_4, window_bounds = array<i64: 1, 32>}, {transform_indices = @transform_5, window_bounds = array<i64: 1, 8, 32>}]} {
    %c0 = arith.constant 0 : index
    %c0_0 = arith.constant 0 : index
    %c0_1 = arith.constant 0 : index
    %0 = vector.load %arg1[%c0, %c0_0, %c0_1] : memref<1x8x32xbf16, #tpu.memory_space<vmem>>, vector<1x8x32xbf16>
    %1 = vector.shape_cast %0 : vector<1x8x32xbf16> to vector<8x32xbf16>
    %c0_2 = arith.constant 0 : index
    %c0_3 = arith.constant 0 : index
    %2 = vector.load %arg2[%c0_2, %c0_3] : memref<32x96xbf16, #tpu.memory_space<vmem>>, vector<32x96xbf16>
    %cst = arith.constant dense<0.000000e+00> : vector<8x96xf32>
    %3 = tpu.matmul %1, %2, %cst {dimension_numbers = #tpu.dot_dimension_numbers<[1], [0], [0], [1], [0, 0, 1, 1], [], []>} : vector<8x32xbf16>, vector<32x96xbf16>, vector<8x96xf32> -> vector<8x96xf32>
    %c0_4 = arith.constant 0 : index
    %c0_5 = arith.constant 0 : index
    %4 = vector.load %arg3[%c0_4, %c0_5] : memref<1x96xf32, #tpu.memory_space<vmem>>, vector<1x96xf32>
    %5 = vector.broadcast %4 : vector<1x96xf32> to vector<8x96xf32>
    %6 = arith.addf %3, %5 : vector<8x96xf32>
    %7 = vector.extract_strided_slice %6 {offsets = [0, 0], sizes = [8, 32], strides = [1, 1]} : vector<8x96xf32> to vector<8x32xf32>
    %8 = vector.extract_strided_slice %6 {offsets = [0, 32], sizes = [8, 32], strides = [1, 1]} : vector<8x96xf32> to vector<8x32xf32>
    %9 = vector.extract_strided_slice %6 {offsets = [0, 64], sizes = [8, 32], strides = [1, 1]} : vector<8x96xf32> to vector<8x32xf32>
    %10 = vector.shape_cast %7 : vector<8x32xf32> to vector<1x8x4x8xf32>
    %11 = arith.truncf %10 : vector<1x8x4x8xf32> to vector<1x8x4x8xbf16>
    %12 = tpu.transpose %11, [0, 2, 1, 3] : vector<1x8x4x8xbf16> -> vector<1x4x8x8xbf16>
    %13 = vector.shape_cast %12 : vector<1x4x8x8xbf16> to vector<4x8x8xbf16>
    %14 = vector.shape_cast %8 : vector<8x32xf32> to vector<1x8x4x8xf32>
    %15 = arith.truncf %14 : vector<1x8x4x8xf32> to vector<1x8x4x8xbf16>
    %16 = tpu.transpose %15, [0, 2, 1, 3] : vector<1x8x4x8xbf16> -> vector<1x4x8x8xbf16>
    %17 = vector.shape_cast %16 : vector<1x4x8x8xbf16> to vector<4x8x8xbf16>
    %18 = vector.shape_cast %9 : vector<8x32xf32> to vector<1x8x4x8xf32>
    %19 = arith.truncf %18 : vector<1x8x4x8xf32> to vector<1x8x4x8xbf16>
    %20 = tpu.transpose %19, [0, 2, 1, 3] : vector<1x8x4x8xbf16> -> vector<1x4x8x8xbf16>
    %21 = vector.shape_cast %20 : vector<1x4x8x8xbf16> to vector<4x8x8xbf16>
    "tpu.trace_start"() <{level = 10 : i32, message = "bqd,bkd->bqk"}> : () -> ()
    %cst_6 = arith.constant dense<0.000000e+00> : vector<4x8x8xf32>
    %22 = tpu.matmul %13, %17, %cst_6 {dimension_numbers = #tpu.dot_dimension_numbers<[2], [2], [1], [1], [0, 0, 0, 1, 1, 1], [0], [0]>} : vector<4x8x8xbf16>, vector<4x8x8xbf16>, vector<4x8x8xf32> -> vector<4x8x8xf32>
    "tpu.trace_stop"() : () -> ()
    %cst_7 = arith.constant dense<0xFF800000> : vector<4x8xf32>
    %23 = vector.multi_reduction <maximumf>, %22, %cst_7 [2] : vector<4x8x8xf32> to vector<4x8xf32>
    %24 = vector.shape_cast %23 : vector<4x8xf32> to vector<4x8x1xf32>
    %25 = vector.broadcast %24 : vector<4x8x1xf32> to vector<4x8x8xf32>
    %26 = arith.subf %22, %25 : vector<4x8x8xf32>
    %27 = math.exp %26 : vector<4x8x8xf32>
    %cst_8 = arith.constant dense<0.000000e+00> : vector<4x8xf32>
    %28 = vector.multi_reduction <add>, %27, %cst_8 [2] : vector<4x8x8xf32> to vector<4x8xf32>
    %29 = vector.shape_cast %28 : vector<4x8xf32> to vector<4x8x1xf32>
    %30 = tpu.reciprocal %29 {approx = true} : vector<4x8x1xf32> -> vector<4x8x1xf32>
    %31 = vector.broadcast %30 : vector<4x8x1xf32> to vector<4x8x8xf32>
    %32 = arith.mulf %27, %31 : vector<4x8x8xf32>
    %33 = arith.truncf %32 : vector<4x8x8xf32> to vector<4x8x8xbf16>
    "tpu.trace_start"() <{level = 10 : i32, message = "bqk,bkd->bqd"}> : () -> ()
    %cst_9 = arith.constant dense<0.000000e+00> : vector<4x8x8xf32>
    %34 = tpu.matmul %33, %21, %cst_9 {dimension_numbers = #tpu.dot_dimension_numbers<[2], [1], [1], [2], [0, 0, 0, 1, 1, 2], [0], [0]>} : vector<4x8x8xbf16>, vector<4x8x8xbf16>, vector<4x8x8xf32> -> vector<4x8x8xf32>
    "tpu.trace_stop"() : () -> ()
    %35 = vector.shape_cast %34 : vector<4x8x8xf32> to vector<1x4x8x8xf32>
    %36 = tpu.transpose %35, [0, 2, 1, 3] : vector<1x4x8x8xf32> -> vector<1x8x4x8xf32>
    %37 = vector.shape_cast %36 : vector<1x8x4x8xf32> to vector<8x32xf32>
    %38 = arith.truncf %37 : vector<8x32xf32> to vector<8x32xbf16>
    %c0_10 = arith.constant 0 : index
    %c0_11 = arith.constant 0 : index
    %39 = vector.load %arg4[%c0_10, %c0_11] : memref<32x32xbf16, #tpu.memory_space<vmem>>, vector<32x32xbf16>
    %cst_12 = arith.constant dense<0.000000e+00> : vector<8x32xf32>
    %40 = tpu.matmul %38, %39, %cst_12 {dimension_numbers = #tpu.dot_dimension_numbers<[1], [0], [0], [1], [0, 0, 1, 1], [], []>} : vector<8x32xbf16>, vector<32x32xbf16>, vector<8x32xf32> -> vector<8x32xf32>
    %c0_13 = arith.constant 0 : index
    %c0_14 = arith.constant 0 : index
    %41 = vector.load %arg5[%c0_13, %c0_14] : memref<1x32xf32, #tpu.memory_space<vmem>>, vector<1x32xf32>
    %42 = vector.broadcast %41 : vector<1x32xf32> to vector<8x32xf32>
    %43 = arith.addf %40, %42 : vector<8x32xf32>
    %44 = vector.shape_cast %43 : vector<8x32xf32> to vector<1x8x32xf32>
    %c0_15 = arith.constant 0 : index
    %c0_16 = arith.constant 0 : index
    %c0_17 = arith.constant 0 : index
    %45 = vector.load %arg6[%c0_15, %c0_16, %c0_17] : memref<1x8x32xf32, #tpu.memory_space<vmem>>, vector<1x8x32xf32>
    tpu.vector_store %arg6[%c0_15, %c0_16, %c0_17], %44 {strides = array<i32>} : memref<1x8x32xf32, #tpu.memory_space<vmem>>, vector<1x8x32xf32>,
    return
  }
  func.func @transform_0(%arg0: i32) -> (i32, i32, i32) {
    %c0_i32 = arith.constant 0 : i32
    %c0_i32_0 = arith.constant 0 : i32
    %c0_i32_1 = arith.constant 0 : i32
    return %arg0, %c0_i32, %c0_i32_0 : i32, i32, i32
  }
  func.func @transform_1(%arg0: i32) -> (i32, i32) {
    %c0_i32 = arith.constant 0 : i32
    %c0_i32_0 = arith.constant 0 : i32
    %c0_i32_1 = arith.constant 0 : i32
    return %c0_i32, %c0_i32_0 : i32, i32
  }
  func.func @transform_2(%arg0: i32) -> (i32, i32) {
    %c0_i32 = arith.constant 0 : i32
    %c0_i32_0 = arith.constant 0 : i32
    %c0_i32_1 = arith.constant 0 : i32
    return %c0_i32, %c0_i32_0 : i32, i32
  }
  func.func @transform_3(%arg0: i32) -> (i32, i32) {
    %c0_i32 = arith.constant 0 : i32
    %c0_i32_0 = arith.constant 0 : i32
    %c0_i32_1 = arith.constant 0 : i32
    return %c0_i32, %c0_i32_0 : i32, i32
  }
  func.func @transform_4(%arg0: i32) -> (i32, i32) {
    %c0_i32 = arith.constant 0 : i32
    %c0_i32_0 = arith.constant 0 : i32
    %c0_i32_1 = arith.constant 0 : i32
    return %c0_i32, %c0_i32_0 : i32, i32
  }
  func.func @transform_5(%arg0: i32) -> (i32, i32, i32) {
    %c0_i32 = arith.constant 0 : i32
    %c0_i32_0 = arith.constant 0 : i32
    %c0_i32_1 = arith.constant 0 : i32
    return %arg0, %c0_i32, %c0_i32_0 : i32, i32, i32
  }
}

</mosaic_0001>

<llo_original>
// kernel: tpu_custom_call.1
$region0: #{tpu_custom_call.1}
  #allocation0 [shape = 'u32[]', space=smem, size = 0x4, offset = 0x4, fixed_abs, tag = 'smem constant byte address 0x4 - core index']
  #allocation1 [shape = 'u32[72,128]{1,0:T(1,128)}', space=vmem, size = 0x9000, scoped, tag = 'internal scratch']
  %s0 = inlined_call_operand.hbm [shape: bf16[2,8,32], index: 0, kind: input, shape index: {}]
  %s1 = inlined_call_operand.hbm [shape: bf16[32,96], index: 1, kind: input, shape index: {}]
  %s2 = inlined_call_operand.vmem [shape: f32[1,96], index: 2, kind: input, shape index: {}]
  %s3 = inlined_call_operand.hbm [shape: bf16[32,32], index: 3, kind: input, shape index: {}]
  %s4 = inlined_call_operand.vmem [shape: f32[1,32], index: 4, kind: input, shape index: {}]
  %s5 = inlined_call_operand.hbm [shape: f32[2,8,32], index: 5, kind: output, shape index: {}]
  %s6 = sld [smem:[#allocation0]]
  $region65: #{tpu_custom_call.1} parent=0
    _
  %s8 = ssub.s32 1, %s6
  %s9 = scalar_select 0, %s8, %s6
  $region1: #{tpu_custom_call.1} parent=0
    #allocation2 [shape = 'u8[4096]{0}', space=vmem, size = 0x1000, scoped, tag = 'input window, operand 0']
    #allocation3 [shape = 's32[2]{0}', space=sflag, size = 0x8, scoped, tag = 'scoped memory for tpu_custom_call.1']
    #allocation4 [shape = 's32[2]{0}', space=sflag, size = 0x8, scoped, tag = 'scoped memory for tpu_custom_call.1']
    #allocation5 [shape = 'u8[8192]{0}', space=vmem, size = 0x2000, scoped, tag = 'input window, operand 1, single buffered']
    #allocation6 [shape = 's32[1]{0}', space=sflag, size = 0x4, scoped, tag = 'scoped memory for tpu_custom_call.1']
    #allocation7 [shape = 'u8[8192]{0}', space=vmem, size = 0x2000, scoped, tag = 'input window, operand 3, single buffered']
    #allocation8 [shape = 'u8[8192]{0}', space=vmem, size = 0x2000, scoped, tag = 'output window, operand 0']
    %10 = vsyncpa [#allocation3], 0
    %s11 = scalar_lea.sflag [#allocation3], 1
    %12 = vsyncpa %s11, 0
    %13 = vsyncpa [#allocation6], 0
    %14 = vsyncpa [#allocation4], 0
    %s15 = scalar_lea.sflag [#allocation4], 1
    %16 = vsyncpa %s15, 0
    loop: start=0, step=1, limit=4
    $region2: #{tpu_custom_call.1} parent=1 // loop_pre_header
      _
    $region3: #{tpu_custom_call.1} parent=1 // loop_header
      %s18 = sphi 0, %s22
      %p19 = scmp.ge.s32.totalorder %s18, 4
      %s28 = sphi 0, %s30
      %s31 = sphi 0, %s28
      %s32 = sphi 0, %s31
      %s48 = sphi 0, %s32
      %s52 = sphi 0, %s52
      %s54 = sphi 0, %s52
      %s55 = sphi 0, %s54
      %s69 = sphi 0, %s55
      %s73 = sphi 0, %s73
      %s75 = sphi 0, %s73
      %s76 = sphi 0, %s75
      %s90 = sphi 0, %s76
      %s94 = sphi 0, %s94
      %s96 = sphi 0, %s94
      %s97 = sphi 0, %s96
      %s111 = sphi 0, %s97
      %s115 = sphi 0, %s115
      %s117 = sphi 0, %s115
      %s118 = sphi 0, %s117
      %s132 = sphi 0, %s118
      %s138 = sphi 0, %s140
      %s141 = sphi 0, %s138
      %s142 = sphi 0, %s141
      %s158 = sphi 0, %s142
    $region4: #{tpu_custom_call.1} parent=1 // loop_header_branch
      %21 = sbr.rel (%p19) target = $region8
    $region5: #{tpu_custom_call.1} parent=1 // loop_body
      %s23 = ssub.s32 %s18, 1
      %s24 = ssub.s32 %s18, 2
      %s25 = sadd.s32 %s18, 1
      %s26 = ssub.s32 %s18, %s25
      %p27 = scmp.eq.s32.totalorder %s26, 0
      %s29 = sadd.s32 %s28, 1
      %s30 = scalar_select %p27, %s28, %s29
      %p33 = pneg %p27
      %p34 = scmp.eq.s32.totalorder %s18, 1
      %p35 = por %p33, %p34
      %p36 = scmp.ne.s32.totalorder %s28, %s31
      %p37 = scmp.eq.s32.totalorder %s18, 0
      %p38 = por %p36, %p37
      %p39 = scmp.ne.s32.totalorder %s28, %s31
      %p40 = scmp.eq.s32.totalorder %s23, 1
      %p41 = por %p39, %p40
      %p42 = scmp.ne.s32.totalorder %s31, %s32
      %p43 = scmp.eq.s32.totalorder %s23, 0
      %p44 = por %p42, %p43
      %p45 = scmp.ne.s32.totalorder %s31, %s32
      %p46 = scmp.eq.s32.totalorder %s24, 1
      %p47 = por %p45, %p46
      %p49 = scmp.ne.s32.totalorder %s32, %s48
      %p50 = scmp.eq.s32.totalorder %s24, 0
      %p51 = por %p49, %p50
      %s53 = sadd.s32 %s52, 1
      %p56 = scmp.eq.s32.totalorder %s18, 1
      %p57 = scmp.ne.s32.totalorder %s52, %s54
      %p58 = scmp.eq.s32.totalorder %s18, 0
      %p59 = por %p57, %p58
      %p60 = scmp.ne.s32.totalorder %s52, %s54
      %p61 = scmp.eq.s32.totalorder %s23, 1
      %p62 = por %p60, %p61
      %p63 = scmp.ne.s32.totalorder %s54, %s55
      %p64 = scmp.eq.s32.totalorder %s23, 0
      %p65 = por %p63, %p64
      %p66 = scmp.ne.s32.totalorder %s54, %s55
      %p67 = scmp.eq.s32.totalorder %s24, 1
      %p68 = por %p66, %p67
      %p70 = scmp.ne.s32.totalorder %s55, %s69
      %p71 = scmp.eq.s32.totalorder %s24, 0
      %p72 = por %p70, %p71
      %s74 = sadd.s32 %s73, 1
      %p77 = scmp.eq.s32.totalorder %s18, 1
      %p78 = scmp.ne.s32.totalorder %s73, %s75
      %p79 = scmp.eq.s32.totalorder %s18, 0
      %p80 = por %p78, %p79
      %p81 = scmp.ne.s32.totalorder %s73, %s75
      %p82 = scmp.eq.s32.totalorder %s23, 1
      %p83 = por %p81, %p82
      %p84 = scmp.ne.s32.totalorder %s75, %s76
      %p85 = scmp.eq.s32.totalorder %s23, 0
      %p86 = por %p84, %p85
      %p87 = scmp.ne.s32.totalorder %s75, %s76
      %p88 = scmp.eq.s32.totalorder %s24, 1
      %p89 = por %p87, %p88
      %p91 = scmp.ne.s32.totalorder %s76, %s90
      %p92 = scmp.eq.s32.totalorder %s24, 0
      %p93 = por %p91, %p92
      %s95 = sadd.s32 %s94, 1
      %p98 = scmp.eq.s32.totalorder %s18, 1
      %p99 = scmp.ne.s32.totalorder %s94, %s96
      %p100 = scmp.eq.s32.totalorder %s18, 0
      %p101 = por %p99, %p100
      %p102 = scmp.ne.s32.totalorder %s94, %s96
      %p103 = scmp.eq.s32.totalorder %s23, 1
      %p104 = por %p102, %p103
      %p105 = scmp.ne.s32.totalorder %s96, %s97
      %p106 = scmp.eq.s32.totalorder %s23, 0
      %p107 = por %p105, %p106
      %p108 = scmp.ne.s32.totalorder %s96, %s97
      %p109 = scmp.eq.s32.totalorder %s24, 1
      %p110 = por %p108, %p109
      %p112 = scmp.ne.s32.totalorder %s97, %s111
      %p113 = scmp.eq.s32.totalorder %s24, 0
      %p114 = por %p112, %p113
      %s116 = sadd.s32 %s115, 1
      %p119 = scmp.eq.s32.totalorder %s18, 1
      %p120 = scmp.ne.s32.totalorder %s115, %s117
      %p121 = scmp.eq.s32.totalorder %s18, 0
      %p122 = por %p120, %p121
      %p123 = scmp.ne.s32.totalorder %s115, %s117
      %p124 = scmp.eq.s32.totalorder %s23, 1
      %p125 = por %p123, %p124
      %p126 = scmp.ne.s32.totalorder %s117, %s118
      %p127 = scmp.eq.s32.totalorder %s23, 0
      %p128 = por %p126, %p127
      %p129 = scmp.ne.s32.totalorder %s117, %s118
      %p130 = scmp.eq.s32.totalorder %s24, 1
      %p131 = por %p129, %p130
      %p133 = scmp.ne.s32.totalorder %s118, %s132
      %p134 = scmp.eq.s32.totalorder %s24, 0
      %p135 = por %p133, %p134
      %s136 = ssub.s32 %s18, %s25
      %p137 = scmp.eq.s32.totalorder %s136, 0
      %s139 = sadd.s32 %s138, 1
      %s140 = scalar_select %p137, %s138, %s139
      %p143 = pneg %p137
      %p144 = scmp.eq.s32.totalorder %s18, 1
      %p145 = por %p143, %p144
      %p146 = scmp.ne.s32.totalorder %s138, %s141
      %p147 = scmp.eq.s32.totalorder %s18, 0
      %p148 = por %p146, %p147
      %p149 = scmp.ne.s32.totalorder %s138, %s141
      %p150 = scmp.eq.s32.totalorder %s23, 1
      %p151 = por %p149, %p150
      %p152 = scmp.ne.s32.totalorder %s141, %s142
      %p153 = scmp.eq.s32.totalorder %s23, 0
      %p154 = por %p152, %p153
      %p155 = scmp.ne.s32.totalorder %s141, %s142
      %p156 = scmp.eq.s32.totalorder %s24, 1
      %p157 = por %p155, %p156
      %p159 = scmp.ne.s32.totalorder %s142, %s158
      %p160 = scmp.eq.s32.totalorder %s24, 0
      %p161 = por %p159, %p160
      %p162 = scmp.le.s32.totalorder 1, %s18
      %p163 = scmp.lt.s32.totalorder %s18, 3
      %p164 = pnand %p162, %p163
      %p165 = pneg %p164
      // Predicated region
      $region9: #{tpu_custom_call.1} parent=5 // pred_check
        _
      $region10: #{tpu_custom_call.1} parent=5 // pred_check_branch
        %167 = sbr.rel (%p164) target = $region12
      $region11: #{tpu_custom_call.1} parent=5 // pred_region
        %s168 = ssub.s32 %s18, 1
        // Predicated region
        $region13: #{tpu_custom_call.1} parent=11 // pred_check
          %p169 = pneg %p65
        $region14: #{tpu_custom_call.1} parent=11 // pred_check_branch
          %171 = sbr.rel (%p169) target = $region16
        $region15: #{tpu_custom_call.1} parent=11 // pred_region
          %173 = vsyncadd [#allocation6], 0
          %s174 = sshll.u32 %s1, 4
          %s175 = int_to_ptr.hbm [resolvable:$true] %s174
          %s176 = sshll.u32 [#allocation5], 4
          %s177 = int_to_ptr.vmem [resolvable:$true] %s176
          %182 = dma.hbm_to_vmem [thread:$0]  %s175, 256, %s177, [#allocation6], 64, 64, 4
        $region16: #{tpu_custom_call.1} parent=11 // pred_fallthru
          _
        // Predicated region
        $region17: #{tpu_custom_call.1} parent=11 // pred_check
          %p183 = pneg %p86
        $region18: #{tpu_custom_call.1} parent=11 // pred_check_branch
          %185 = sbr.rel (%p183) target = $region20
        $region19: #{tpu_custom_call.1} parent=11 // pred_region
          _
        $region20: #{tpu_custom_call.1} parent=11 // pred_fallthru
          _
        // Predicated region
        $region21: #{tpu_custom_call.1} parent=11 // pred_check
          %p186 = pneg %p107
        $region22: #{tpu_custom_call.1} parent=11 // pred_check_branch
          %188 = sbr.rel (%p186) target = $region24
        $region23: #{tpu_custom_call.1} parent=11 // pred_region
          %190 = vsyncadd [#allocation6], 0
          %s191 = sshll.u32 %s3, 4
          %s192 = int_to_ptr.hbm [resolvable:$true] %s191
          %s193 = sshll.u32 [#allocation7], 4
          %s194 = int_to_ptr.vmem [resolvable:$true] %s193
          %199 = dma.hbm_to_vmem [thread:$0]  %s192, 256, %s194, [#allocation6], 64, 64, 4
        $region24: #{tpu_custom_call.1} parent=11 // pred_fallthru
          _
        // Predicated region
        $region25: #{tpu_custom_call.1} parent=11 // pred_check
          %p200 = pneg %p128
        $region26: #{tpu_custom_call.1} parent=11 // pred_check_branch
          %202 = sbr.rel (%p200) target = $region28
        $region27: #{tpu_custom_call.1} parent=11 // pred_region
          _
        $region28: #{tpu_custom_call.1} parent=11 // pred_fallthru
          _
      $region12: #{tpu_custom_call.1} parent=5 // pred_fallthru
        _
      %p203 = scmp.lt.s32.totalorder %s18, 2
      // Predicated region
      $region29: #{tpu_custom_call.1} parent=5 // pred_check
        %p204 = pneg %p203
      $region30: #{tpu_custom_call.1} parent=5 // pred_check_branch
        %206 = sbr.rel (%p204) target = $region32
      $region31: #{tpu_custom_call.1} parent=5 // pred_region
        // Predicated region
        $region33: #{tpu_custom_call.1} parent=31 // pred_check
          %p207 = pneg %p38
        $region34: #{tpu_custom_call.1} parent=31 // pred_check_branch
          %209 = sbr.rel (%p207) target = $region36
        $region35: #{tpu_custom_call.1} parent=31 // pred_region
          %s210 = sand.u32 %s28, 1
          %s211 = scalar_lea.sflag [#allocation3], %s210
          %s212 = sand.u32 %s28, 1
          %s213 = smul.addr %s212, 4
          %s214 = scalar_lea.vmem [#allocation2], %s213
          %216 = vsyncadd %s211, 0
          %s217 = smul.addr %s18, 4
          %s218 = scalar_lea.hbm %s0, %s217
          %s220 = sshll.u32 %s218, 4
          %s221 = int_to_ptr.hbm [resolvable:$true] %s220
          %s222 = sshll.u32 %s214, 4
          %s223 = int_to_ptr.vmem [resolvable:$true] %s222
          %225 = dma.hbm_to_vmem [thread:$0]  %s221, 64, %s223, %s211
        $region36: #{tpu_custom_call.1} parent=31 // pred_fallthru
          _
      $region32: #{tpu_custom_call.1} parent=5 // pred_fallthru
        _
      %p226 = scmp.le.s32.totalorder 1, %s18
      %p227 = scmp.lt.s32.totalorder %s18, 3
      %p228 = pnand %p226, %p227
      %p229 = pneg %p228
      // Predicated region
      $region37: #{tpu_custom_call.1} parent=5 // pred_check
        _
      $region38: #{tpu_custom_call.1} parent=5 // pred_check_branch
        %231 = sbr.rel (%p228) target = $region40
      $region39: #{tpu_custom_call.1} parent=5 // pred_region
        %s232 = ssub.s32 %s18, 1
        %s233 = sand.u32 %s31, 1
        %s234 = scalar_lea.sflag [#allocation3], %s233
        %s235 = sand.u32 %s31, 1
        %s236 = smul.addr %s235, 4
        %s237 = scalar_lea.vmem [#allocation2], %s236
        // Predicated region
        $region41: #{tpu_custom_call.1} parent=39 // pred_check
          %p238 = pneg %p44
        $region42: #{tpu_custom_call.1} parent=39 // pred_check_branch
          %240 = sbr.rel (%p238) target = $region44
        $region43: #{tpu_custom_call.1} parent=39 // pred_region
          %242 = dma.done %s234, 64
        $region44: #{tpu_custom_call.1} parent=39 // pred_fallthru
          _
        // Predicated region
        $region45: #{tpu_custom_call.1} parent=39 // pred_check
          %p243 = pneg %p65
        $region46: #{tpu_custom_call.1} parent=39 // pred_check_branch
          %245 = sbr.rel (%p243) target = $region48
        $region47: #{tpu_custom_call.1} parent=39 // pred_region
          %247 = dma.done [#allocation6], 256
        $region48: #{tpu_custom_call.1} parent=39 // pred_fallthru
          _
        // Predicated region
        $region49: #{tpu_custom_call.1} parent=39 // pred_check
          %p248 = pneg %p107
        $region50: #{tpu_custom_call.1} parent=39 // pred_check_branch
          %250 = sbr.rel (%p248) target = $region52
        $region51: #{tpu_custom_call.1} parent=39 // pred_region
          %252 = dma.done [#allocation6], 256
        $region52: #{tpu_custom_call.1} parent=39 // pred_fallthru
          _
        %s253 = sand.u32 %s31, 1
        %s254 = scalar_lea.sflag [#allocation3], %s253
        %s255 = sand.u32 %s31, 1
        %s256 = smul.addr %s255, 4
        %s257 = scalar_lea.vmem [#allocation2], %s256
        %p258 = pneg %p44
        %p259 = pneg %p41
        %p260 = pneg %p65
        %p261 = pneg %p62
        %p262 = pneg %p86
        %p263 = pneg %p83
        %p264 = pneg %p107
        %p265 = pneg %p104
        %p266 = pneg %p128
        %p267 = pneg %p125
        %p268 = pneg %p154
        %p269 = pneg %p151
        %s270 = sand.u32 %s141, 1
        %s271 = scalar_lea.sflag [#allocation4], %s270
        %s272 = sand.u32 %s141, 1
        %s273 = smul.addr %s272, 8
        %s274 = scalar_lea.vmem [#allocation8], %s273
        %v276 = vld [vmem:[%s237] sm:$0xf]
        %v277 = vld [vmem:[#allocation5] sm:$0xf]
        %v278 = vld [vmem:[#allocation5 + $0x4] sm:$0xf]
        %v279 = vld [vmem:[#allocation5 + $0x8] sm:$0xf]
        %v280 = vld [vmem:[#allocation5 + $0xc] sm:$0xf]
        %v281 = vld [vmem:[%s2] sm:$0x1]
        %v283 = vperm.slane %v281, 0
        %v289 = vunpack.c.l.b16 %v277
        %v290 = vunpack.c.l.b16 %v278
        %v291 = vunpack.c.l.b16 %v279
        %v292 = vunpack.c.l.b16 %v280
        %v293 = vpack.c.b16 %v290, %v289
        %v294 = vpack.c.b16 %v292, %v291
        %vm297 = vcmask 261120
        %v299 = vsel %vm297, %v276, 0
        %301 = vmatpush.bf16.msra.mxu0 0
        %302 = vmatpush.bf16.msra.mxu0 0
        %303 = vmatpush.bf16.msra.mxu0 0
        %304 = vmatpush.bf16.msra.mxu0 0
        %305 = vmatpush.bf16.msra.mxu0 0
        %306 = vmatpush.bf16.msra.mxu0 0
        %307 = vmatpush.bf16.msra.mxu0 %v294
        %308 = vmatpush.bf16.msra.mxu0 %v293
        %309 = vmatmul.bf16.gmra.mxu0 %v299
        %v310 = vpop.f32.mrf.mxu0
        %v311 = vadd.f32 %v283, %v310
        %v312 = vpop.f32.mrf.mxu0
        %313 = vdwg.mxu0
        %315 = vrot.lane.b32.xlu0 %v311, 120
        %v316 = vpop.permute.xlu0 %315
        %318 = vrot.lane.b32.xlu0 %v311, 112
        %v319 = vpop.permute.xlu0 %318
        %321 = vrot.lane.b32.xlu0 %v311, 104
        %v322 = vpop.permute.xlu0 %321
        %v324 = vrot.slane %v319, 4
        %vm325 = vcmask 1047556
        %v326 = vsel %vm325, %v324, %v311
        %v327 = vrot.slane %v311, 4
        %v328 = vsel %vm325, %v319, %v327
        %v330 = vunpack.c.l.s4 1983009808
        %v331 = vunpack.c.0.s8 %v330
        %v332 = vperm.slane %v326, %v331
        %v334 = vunpack.c.l.s4 1983009808
        %v335 = vunpack.c.0.s8 %v334
        %v336 = vperm.slane %v328, %v335
        %v337 = vrot.slane %v322, 4
        %v338 = vsel %vm325, %v337, %v316
        %v339 = vrot.slane %v316, 4
        %v340 = vsel %vm325, %v322, %v339
        %v342 = vunpack.c.l.s4 1983009808
        %v343 = vunpack.c.0.s8 %v342
        %v344 = vperm.slane %v338, %v343
        %v346 = vunpack.c.l.s4 1983009808
        %v347 = vunpack.c.0.s8 %v346
        %v348 = vperm.slane %v340, %v347
        %v349 = vrot.slane %v344, 4
        %v350 = vsel %vm325, %v349, %v332
        %v351 = vrot.slane %v332, 4
        %v352 = vsel %vm325, %v344, %v351
        %v354 = vunpack.c.l.s4 1934713408
        %v355 = vunpack.c.0.s8 %v354
        %v356 = vperm.slane %v350, %v355
        %v358 = vunpack.c.l.s4 1934713408
        %v359 = vunpack.c.0.s8 %v358
        %v360 = vperm.slane %v352, %v359
        %v361 = vrot.slane %v348, 4
        %v362 = vsel %vm325, %v361, %v336
        %v363 = vrot.slane %v336, 4
        %v364 = vsel %vm325, %v348, %v363
        %v366 = vunpack.c.l.s4 1934713408
        %v367 = vunpack.c.0.s8 %v366
        %v368 = vperm.slane %v362, %v367
        %v370 = vunpack.c.l.s4 1934713408
        %v371 = vunpack.c.0.s8 %v370
        %v372 = vperm.slane %v364, %v371
        %v373 = vrot.slane %v356, 4
        %v374 = vsel %vm325, 0.0, %v373
        %v375 = vrot.slane %v360, 4
        %v376 = vsel %vm325, 0.0, %v375
        %v377 = vrot.slane %v368, 4
        %v378 = vsel %vm325, 0.0, %v377
        %v379 = vrot.slane %v372, 4
        %v380 = vsel %vm325, 0.0, %v379
        %v381 = vpack.c.bf16 %v356, %v356
        %v382 = vpack.c.bf16 %v374, %v374
        %v383 = vpack.c.bf16 %v360, %v360
        %v384 = vpack.c.bf16 %v376, %v376
        %v385 = vpack.c.bf16 %v368, %v368
        %v386 = vpack.c.bf16 %v378, %v378
        %v387 = vpack.c.bf16 %v372, %v372
        %v388 = vpack.c.bf16 %v380, %v380
        %v389 = vrot.slane %v385, 4
        %vm390 = vcmask 1047556
        %v391 = vsel %vm390, %v389, %v381
        %v393 = vunpack.c.l.s4 1983009808
        %v394 = vunpack.c.0.s8 %v393
        %v395 = vperm.slane %v391, %v394
        %v396 = vrot.slane %v387, 4
        %v397 = vsel %vm390, %v396, %v383
        %v399 = vunpack.c.l.s4 1983009808
        %v400 = vunpack.c.0.s8 %v399
        %v401 = vperm.slane %v397, %v400
        %v402 = vrot.slane %v401, 4
        %v403 = vsel %vm390, %v402, %v395
        %v405 = vunpack.c.l.s4 1934713408
        %v406 = vunpack.c.0.s8 %v405
        %v407 = vperm.slane %v403, %v406
        %v408 = vrot.slane %v407, 4
        %v409 = vsel %vm390, 0, %v408
        %v410 = vrot.slane %v386, 4
        %v411 = vsel %vm390, %v410, %v382
        %v413 = vunpack.c.l.s4 1983009808
        %v414 = vunpack.c.0.s8 %v413
        %v415 = vperm.slane %v411, %v414
        %v416 = vrot.slane %v388, 4
        %v417 = vsel %vm390, %v416, %v384
        %v419 = vunpack.c.l.s4 1983009808
        %v420 = vunpack.c.0.s8 %v419
        %v421 = vperm.slane %v417, %v420
        %v422 = vrot.slane %v421, 4
        %v423 = vsel %vm390, %v422, %v415
        %v425 = vunpack.c.l.s4 1934713408
        %v426 = vunpack.c.0.s8 %v425
        %v427 = vperm.slane %v423, %v426
        %v428 = vrot.slane %v427, 4
        %v429 = vsel %vm390, 0, %v428
        %v432 = vpack.i.b16 %v427, %v407
        %v433 = vshrl.u32 %v407, 16
        %v434 = vshrl.u32 %v427, 16
        %v435 = vpack.i.b16 %v434, %v433
        %v438 = vpack.i.b16 %v429, %v409
        %v439 = vshrl.u32 %v409, 16
        %v440 = vshrl.u32 %v429, 16
        %v441 = vpack.i.b16 %v440, %v439
        %442 = vrot.lane.b32.xlu0 %v311, 96
        %v443 = vpop.permute.xlu0 %442
        %444 = vrot.lane.b32.xlu0 %v316, 96
        %v445 = vpop.permute.xlu0 %444
        %446 = vrot.lane.b32.xlu0 %v319, 96
        %v447 = vpop.permute.xlu0 %446
        %448 = vrot.lane.b32.xlu0 %v322, 96
        %v449 = vpop.permute.xlu0 %448
        %v454 = vrot.slane %v447, 4
        %v455 = vsel %vm325, %v454, %v443
        %v456 = vrot.slane %v443, 4
        %v457 = vsel %vm325, %v447, %v456
        %v459 = vunpack.c.l.s4 1983009808
        %v460 = vunpack.c.0.s8 %v459
        %v461 = vperm.slane %v455, %v460
        %v463 = vunpack.c.l.s4 1983009808
        %v464 = vunpack.c.0.s8 %v463
        %v465 = vperm.slane %v457, %v464
        %v466 = vrot.slane %v449, 4
        %v467 = vsel %vm325, %v466, %v445
        %v468 = vrot.slane %v445, 4
        %v469 = vsel %vm325, %v449, %v468
        %v471 = vunpack.c.l.s4 1983009808
        %v472 = vunpack.c.0.s8 %v471
        %v473 = vperm.slane %v467, %v472
        %v475 = vunpack.c.l.s4 1983009808
        %v476 = vunpack.c.0.s8 %v475
        %v477 = vperm.slane %v469, %v476
        %v478 = vrot.slane %v473, 4
        %v479 = vsel %vm325, %v478, %v461
        %v480 = vrot.slane %v461, 4
        %v481 = vsel %vm325, %v473, %v480
        %v483 = vunpack.c.l.s4 1934713408
        %v484 = vunpack.c.0.s8 %v483
        %v485 = vperm.slane %v479, %v484
        %v487 = vunpack.c.l.s4 1934713408
        %v488 = vunpack.c.0.s8 %v487
        %v489 = vperm.slane %v481, %v488
        %v490 = vrot.slane %v477, 4
        %v491 = vsel %vm325, %v490, %v465
        %v492 = vrot.slane %v465, 4
        %v493 = vsel %vm325, %v477, %v492
        %v495 = vunpack.c.l.s4 1934713408
        %v496 = vunpack.c.0.s8 %v495
        %v497 = vperm.slane %v491, %v496
        %v499 = vunpack.c.l.s4 1934713408
        %v500 = vunpack.c.0.s8 %v499
        %v501 = vperm.slane %v493, %v500
        %v502 = vrot.slane %v485, 4
        %v503 = vsel %vm325, 0.0, %v502
        %v504 = vrot.slane %v489, 4
        %v505 = vsel %vm325, 0.0, %v504
        %v506 = vrot.slane %v497, 4
        %v507 = vsel %vm325, 0.0, %v506
        %v508 = vrot.slane %v501, 4
        %v509 = vsel %vm325, 0.0, %v508
        %v510 = vpack.c.bf16 %v485, %v485
        %v511 = vpack.c.bf16 %v503, %v503
        %v512 = vpack.c.bf16 %v489, %v489
        %v513 = vpack.c.bf16 %v505, %v505
        %v514 = vpack.c.bf16 %v497, %v497
        %v515 = vpack.c.bf16 %v507, %v507
        %v516 = vpack.c.bf16 %v501, %v501
        %v517 = vpack.c.bf16 %v509, %v509
        %v518 = vrot.slane %v514, 4
        %v519 = vsel %vm390, %v518, %v510
        %v521 = vunpack.c.l.s4 1983009808
        %v522 = vunpack.c.0.s8 %v521
        %v523 = vperm.slane %v519, %v522
        %v524 = vrot.slane %v516, 4
        %v525 = vsel %vm390, %v524, %v512
        %v527 = vunpack.c.l.s4 1983009808
        %v528 = vunpack.c.0.s8 %v527
        %v529 = vperm.slane %v525, %v528
        %v530 = vrot.slane %v529, 4
        %v531 = vsel %vm390, %v530, %v523
        %v533 = vunpack.c.l.s4 1934713408
        %v534 = vunpack.c.0.s8 %v533
        %v535 = vperm.slane %v531, %v534
        %v536 = vrot.slane %v535, 4
        %v537 = vsel %vm390, 0, %v536
        %v538 = vrot.slane %v515, 4
        %v539 = vsel %vm390, %v538, %v511
        %v541 = vunpack.c.l.s4 1983009808
        %v542 = vunpack.c.0.s8 %v541
        %v543 = vperm.slane %v539, %v542
        %v544 = vrot.slane %v517, 4
        %v545 = vsel %vm390, %v544, %v513
        %v547 = vunpack.c.l.s4 1983009808
        %v548 = vunpack.c.0.s8 %v547
        %v549 = vperm.slane %v545, %v548
        %v550 = vrot.slane %v549, 4
        %v551 = vsel %vm390, %v550, %v543
        %v553 = vunpack.c.l.s4 1934713408
        %v554 = vunpack.c.0.s8 %v553
        %v555 = vperm.slane %v551, %v554
        %v556 = vrot.slane %v555, 4
        %v557 = vsel %vm390, 0, %v556
        %v560 = vpack.i.b16 %v555, %v535
        %v561 = vshrl.u32 %v535, 16
        %v562 = vshrl.u32 %v555, 16
        %v563 = vpack.i.b16 %v562, %v561
        %v566 = vpack.i.b16 %v557, %v537
        %v567 = vshrl.u32 %v537, 16
        %v568 = vshrl.u32 %v557, 16
        %v569 = vpack.i.b16 %v568, %v567
        %570 = vrot.lane.b32.xlu0 %v311, 64
        %v571 = vpop.permute.xlu0 %570
        %572 = vrot.lane.b32.xlu0 %v316, 64
        %v573 = vpop.permute.xlu0 %572
        %574 = vrot.lane.b32.xlu0 %v319, 64
        %v575 = vpop.permute.xlu0 %574
        %576 = vrot.lane.b32.xlu0 %v322, 64
        %v577 = vpop.permute.xlu0 %576
        %v582 = vrot.slane %v575, 4
        %v583 = vsel %vm325, %v582, %v571
        %v584 = vrot.slane %v571, 4
        %v585 = vsel %vm325, %v575, %v584
        %v587 = vunpack.c.l.s4 1983009808
        %v588 = vunpack.c.0.s8 %v587
        %v589 = vperm.slane %v583, %v588
        %v591 = vunpack.c.l.s4 1983009808
        %v592 = vunpack.c.0.s8 %v591
        %v593 = vperm.slane %v585, %v592
        %v594 = vrot.slane %v577, 4
        %v595 = vsel %vm325, %v594, %v573
        %v596 = vrot.slane %v573, 4
        %v597 = vsel %vm325, %v577, %v596
        %v599 = vunpack.c.l.s4 1983009808
        %v600 = vunpack.c.0.s8 %v599
        %v601 = vperm.slane %v595, %v600
        %v603 = vunpack.c.l.s4 1983009808
        %v604 = vunpack.c.0.s8 %v603
        %v605 = vperm.slane %v597, %v604
        %v606 = vrot.slane %v601, 4
        %v607 = vsel %vm325, %v606, %v589
        %v608 = vrot.slane %v589, 4
        %v609 = vsel %vm325, %v601, %v608
        %v611 = vunpack.c.l.s4 1934713408
        %v612 = vunpack.c.0.s8 %v611
        %v613 = vperm.slane %v607, %v612
        %v615 = vunpack.c.l.s4 1934713408
        %v616 = vunpack.c.0.s8 %v615
        %v617 = vperm.slane %v609, %v616
        %v618 = vrot.slane %v605, 4
        %v619 = vsel %vm325, %v618, %v593
        %v620 = vrot.slane %v593, 4
        %v621 = vsel %vm325, %v605, %v620
        %v623 = vunpack.c.l.s4 1934713408
        %v624 = vunpack.c.0.s8 %v623
        %v625 = vperm.slane %v619, %v624
        %v627 = vunpack.c.l.s4 1934713408
        %v628 = vunpack.c.0.s8 %v627
        %v629 = vperm.slane %v621, %v628
        %v630 = vrot.slane %v613, 4
        %v631 = vsel %vm325, 0.0, %v630
        %v632 = vrot.slane %v617, 4
        %v633 = vsel %vm325, 0.0, %v632
        %v634 = vrot.slane %v625, 4
        %v635 = vsel %vm325, 0.0, %v634
        %v636 = vrot.slane %v629, 4
        %v637 = vsel %vm325, 0.0, %v636
        %v638 = vpack.c.bf16 %v613, %v613
        %v639 = vpack.c.bf16 %v631, %v631
        %v640 = vpack.c.bf16 %v617, %v617
        %v641 = vpack.c.bf16 %v633, %v633
        %v642 = vpack.c.bf16 %v625, %v625
        %v643 = vpack.c.bf16 %v635, %v635
        %v644 = vpack.c.bf16 %v629, %v629
        %v645 = vpack.c.bf16 %v637, %v637
        %v646 = vrot.slane %v642, 4
        %v647 = vsel %vm390, %v646, %v638
        %v649 = vunpack.c.l.s4 1983009808
        %v650 = vunpack.c.0.s8 %v649
        %v651 = vperm.slane %v647, %v650
        %v652 = vrot.slane %v644, 4
        %v653 = vsel %vm390, %v652, %v640
        %v655 = vunpack.c.l.s4 1983009808
        %v656 = vunpack.c.0.s8 %v655
        %v657 = vperm.slane %v653, %v656
        %v658 = vrot.slane %v657, 4
        %v659 = vsel %vm390, %v658, %v651
        %v661 = vunpack.c.l.s4 1934713408
        %v662 = vunpack.c.0.s8 %v661
        %v663 = vperm.slane %v659, %v662
        %v664 = vrot.slane %v663, 4
        %v665 = vsel %vm390, 0, %v664
        %v666 = vrot.slane %v643, 4
        %v667 = vsel %vm390, %v666, %v639
        %v669 = vunpack.c.l.s4 1983009808
        %v670 = vunpack.c.0.s8 %v669
        %v671 = vperm.slane %v667, %v670
        %v672 = vrot.slane %v645, 4
        %v673 = vsel %vm390, %v672, %v641
        %v675 = vunpack.c.l.s4 1983009808
        %v676 = vunpack.c.0.s8 %v675
        %v677 = vperm.slane %v673, %v676
        %v678 = vrot.slane %v677, 4
        %v679 = vsel %vm390, %v678, %v671
        %v681 = vunpack.c.l.s4 1934713408
        %v682 = vunpack.c.0.s8 %v681
        %v683 = vperm.slane %v679, %v682
        %v684 = vrot.slane %v683, 4
        %v685 = vsel %vm390, 0, %v684
        %v688 = vpack.i.b16 %v683, %v663
        %v689 = vshrl.u32 %v663, 16
        %v690 = vshrl.u32 %v683, 16
        %v691 = vpack.i.b16 %v690, %v689
        %v694 = vpack.i.b16 %v685, %v665
        %v695 = vshrl.u32 %v665, 16
        %v696 = vshrl.u32 %v685, 16
        %v697 = vpack.i.b16 %v696, %v695
        %vm698 = vcmask 64512
        %v700 = vsel %vm698, %v432, 0
        %v703 = vsel %vm698, %v560, 0
        %705 = vmatpush.bf16.xpose.msra.mxu0 0
        %706 = vmatpush.bf16.xpose.msra.mxu0 0
        %707 = vmatpush.bf16.xpose.msra.mxu0 0
        %708 = vmatpush.bf16.xpose.msra.mxu0 0
        %709 = vmatpush.bf16.xpose.msra.mxu0 0
        %710 = vmatpush.bf16.xpose.msra.mxu0 0
        %711 = vmatpush.bf16.xpose.msra.mxu0 0
        %712 = vmatpush.bf16.xpose.msra.mxu0 %v703
        %713 = vmatmul.bf16.gmra.mxu0 %v700
        %v714 = vpop.f32.mrf.mxu0
        %v715 = vadd.f32 0.0, %v714
        %v716 = vpop.f32.mrf.mxu0
        %717 = vdwg.mxu0
        %v719 = vsel %vm698, %v435, 0
        %v722 = vsel %vm698, %v563, 0
        %724 = vmatpush.bf16.xpose.msra.mxu0 0
        %725 = vmatpush.bf16.xpose.msra.mxu0 0
        %726 = vmatpush.bf16.xpose.msra.mxu0 0
        %727 = vmatpush.bf16.xpose.msra.mxu0 0
        %728 = vmatpush.bf16.xpose.msra.mxu0 0
        %729 = vmatpush.bf16.xpose.msra.mxu0 0
        %730 = vmatpush.bf16.xpose.msra.mxu0 0
        %731 = vmatpush.bf16.xpose.msra.mxu0 %v722
        %732 = vmatmul.bf16.gmra.mxu0 %v719
        %v733 = vpop.f32.mrf.mxu0
        %v734 = vadd.f32 0.0, %v733
        %v735 = vpop.f32.mrf.mxu0
        %736 = vdwg.mxu0
        %v738 = vsel %vm698, %v438, 0
        %v741 = vsel %vm698, %v566, 0
        %743 = vmatpush.bf16.xpose.msra.mxu0 0
        %744 = vmatpush.bf16.xpose.msra.mxu0 0
        %745 = vmatpush.bf16.xpose.msra.mxu0 0
        %746 = vmatpush.bf16.xpose.msra.mxu0 0
        %747 = vmatpush.bf16.xpose.msra.mxu0 0
        %748 = vmatpush.bf16.xpose.msra.mxu0 0
        %749 = vmatpush.bf16.xpose.msra.mxu0 0
        %750 = vmatpush.bf16.xpose.msra.mxu0 %v741
        %751 = vmatmul.bf16.gmra.mxu0 %v738
        %v752 = vpop.f32.mrf.mxu0
        %v753 = vadd.f32 0.0, %v752
        %v754 = vpop.f32.mrf.mxu0
        %755 = vdwg.mxu0
        %v757 = vsel %vm698, %v441, 0
        %v760 = vsel %vm698, %v569, 0
        %762 = vmatpush.bf16.xpose.msra.mxu0 0
        %763 = vmatpush.bf16.xpose.msra.mxu0 0
        %764 = vmatpush.bf16.xpose.msra.mxu0 0
        %765 = vmatpush.bf16.xpose.msra.mxu0 0
        %766 = vmatpush.bf16.xpose.msra.mxu0 0
        %767 = vmatpush.bf16.xpose.msra.mxu0 0
        %768 = vmatpush.bf16.xpose.msra.mxu0 0
        %769 = vmatpush.bf16.xpose.msra.mxu0 %v760
        %770 = vmatmul.bf16.gmra.mxu0 %v757
        %v771 = vpop.f32.mrf.mxu0
        %v772 = vadd.f32 0.0, %v771
        %v773 = vpop.f32.mrf.mxu0
        %774 = vdwg.mxu0
        %v775 = vsel %vm698, %v715, -inf
        %776 = vmax.xlane.f32.xlu0 %v775
        %v777 = vpop.xlane.xlu0 %776
        %v778 = vsel %vm698, %v734, -inf
        %779 = vmax.xlane.f32.xlu0 %v778
        %v780 = vpop.xlane.xlu0 %779
        %v781 = vsel %vm698, %v753, -inf
        %782 = vmax.xlane.f32.xlu0 %v781
        %v783 = vpop.xlane.xlu0 %782
        %v784 = vsel %vm698, %v772, -inf
        %785 = vmax.xlane.f32.xlu0 %v784
        %v786 = vpop.xlane.xlu0 %785
        %v787 = vsub.f32 %v715, %v777
        %v788 = vsub.f32 %v734, %v780
        %v789 = vsub.f32 %v753, %v783
        %v790 = vsub.f32 %v772, %v786
        %v791 = vmul.f32 %v787, 1.442695
        %v792 = vpow.pop %v791
        %v793 = vmul.f32 %v788, 1.442695
        %v794 = vpow.pop %v793
        %v795 = vmul.f32 %v789, 1.442695
        %v796 = vpow.pop %v795
        %v797 = vmul.f32 %v790, 1.442695
        %v798 = vpow.pop %v797
        %v799 = vsel %vm698, %v792, 0.0
        %800 = vadd.xlane.f32.xlu0 %v799
        %v801 = vpop.xlane.xlu0 %800
        %v802 = vsel %vm698, %v794, 0.0
        %803 = vadd.xlane.f32.xlu0 %v802
        %v804 = vpop.xlane.xlu0 %803
        %v805 = vsel %vm698, %v796, 0.0
        %806 = vadd.xlane.f32.xlu0 %v805
        %v807 = vpop.xlane.xlu0 %806
        %v808 = vsel %vm698, %v798, 0.0
        %809 = vadd.xlane.f32.xlu0 %v808
        %v810 = vpop.xlane.xlu0 %809
        %v811 = vrcp.pop %v801
        %v812 = vrcp.pop %v804
        %v813 = vrcp.pop %v807
        %v814 = vrcp.pop %v810
        %v815 = vmul.f32 %v792, %v811
        %v816 = vmul.f32 %v794, %v812
        %v817 = vmul.f32 %v796, %v813
        %v818 = vmul.f32 %v798, %v814
        %v819 = vpack.c.bf16 %v815, %v815
        %v820 = vpack.c.bf16 %v816, %v816
        %v821 = vpack.c.bf16 %v817, %v817
        %v822 = vpack.c.bf16 %v818, %v818
        %v824 = vsel %vm698, %v819, 0
        %vm826 = vcmask 1043456
        %v828 = vsel %vm826, %v688, 0
        %830 = vmatpush.bf16.msra.mxu0 0
        %831 = vmatpush.bf16.msra.mxu0 0
        %832 = vmatpush.bf16.msra.mxu0 0
        %833 = vmatpush.bf16.msra.mxu0 0
        %834 = vmatpush.bf16.msra.mxu0 0
        %835 = vmatpush.bf16.msra.mxu0 0
        %836 = vmatpush.bf16.msra.mxu0 0
        %837 = vmatpush.bf16.msra.mxu0 %v828
        %838 = vmatmul.bf16.gmra.mxu0 %v824
        %v839 = vpop.f32.mrf.mxu0
        %v840 = vadd.f32 0.0, %v839
        %v841 = vpop.f32.mrf.mxu0
        %842 = vdwg.mxu0
        %v844 = vsel %vm698, %v820, 0
        %v847 = vsel %vm826, %v691, 0
        %849 = vmatpush.bf16.msra.mxu0 0
        %850 = vmatpush.bf16.msra.mxu0 0
        %851 = vmatpush.bf16.msra.mxu0 0
        %852 = vmatpush.bf16.msra.mxu0 0
        %853 = vmatpush.bf16.msra.mxu0 0
        %854 = vmatpush.bf16.msra.mxu0 0
        %855 = vmatpush.bf16.msra.mxu0 0
        %856 = vmatpush.bf16.msra.mxu0 %v847
        %857 = vmatmul.bf16.gmra.mxu0 %v844
        %v858 = vpop.f32.mrf.mxu0
        %v859 = vadd.f32 0.0, %v858
        %v860 = vpop.f32.mrf.mxu0
        %861 = vdwg.mxu0
        %v863 = vsel %vm698, %v821, 0
        %v866 = vsel %vm826, %v694, 0
        %868 = vmatpush.bf16.msra.mxu0 0
        %869 = vmatpush.bf16.msra.mxu0 0
        %870 = vmatpush.bf16.msra.mxu0 0
        %871 = vmatpush.bf16.msra.mxu0 0
        %872 = vmatpush.bf16.msra.mxu0 0
        %873 = vmatpush.bf16.msra.mxu0 0
        %874 = vmatpush.bf16.msra.mxu0 0
        %875 = vmatpush.bf16.msra.mxu0 %v866
        %876 = vmatmul.bf16.gmra.mxu0 %v863
        %v877 = vpop.f32.mrf.mxu0
        %v878 = vadd.f32 0.0, %v877
        %v879 = vpop.f32.mrf.mxu0
        %880 = vdwg.mxu0
        %v882 = vsel %vm698, %v822, 0
        %v885 = vsel %vm826, %v697, 0
        %887 = vmatpush.bf16.msra.mxu0 0
        %888 = vmatpush.bf16.msra.mxu0 0
        %889 = vmatpush.bf16.msra.mxu0 0
        %890 = vmatpush.bf16.msra.mxu0 0
        %891 = vmatpush.bf16.msra.mxu0 0
        %892 = vmatpush.bf16.msra.mxu0 0
        %893 = vmatpush.bf16.msra.mxu0 0
        %894 = vmatpush.bf16.msra.mxu0 %v885
        %895 = vmatmul.bf16.gmra.mxu0 %v882
        %v896 = vpop.f32.mrf.mxu0
        %v897 = vadd.f32 0.0, %v896
        %v898 = vpop.f32.mrf.mxu0
        %899 = vdwg.mxu0
        %v900 = vrot.slane %v878, 4
        %v901 = vsel %vm325, %v900, %v840
        %v902 = vrot.slane %v840, 4
        %v903 = vsel %vm325, %v878, %v902
        %v905 = vunpack.c.l.s4 1983009808
        %v906 = vunpack.c.0.s8 %v905
        %v907 = vperm.slane %v901, %v906
        %v909 = vunpack.c.l.s4 1983009808
        %v910 = vunpack.c.0.s8 %v909
        %v911 = vperm.slane %v903, %v910
        %v912 = vrot.slane %v897, 4
        %v913 = vsel %vm325, %v912, %v859
        %v914 = vrot.slane %v859, 4
        %v915 = vsel %vm325, %v897, %v914
        %v917 = vunpack.c.l.s4 1983009808
        %v918 = vunpack.c.0.s8 %v917
        %v919 = vperm.slane %v913, %v918
        %v921 = vunpack.c.l.s4 1983009808
        %v922 = vunpack.c.0.s8 %v921
        %v923 = vperm.slane %v915, %v922
        %v924 = vrot.slane %v919, 4
        %v925 = vsel %vm325, %v924, %v907
        %v926 = vrot.slane %v907, 4
        %v927 = vsel %vm325, %v919, %v926
        %v929 = vunpack.c.l.s4 1934713408
        %v930 = vunpack.c.0.s8 %v929
        %v931 = vperm.slane %v925, %v930
        %v933 = vunpack.c.l.s4 1934713408
        %v934 = vunpack.c.0.s8 %v933
        %v935 = vperm.slane %v927, %v934
        %v936 = vrot.slane %v923, 4
        %v937 = vsel %vm325, %v936, %v911
        %v938 = vrot.slane %v911, 4
        %v939 = vsel %vm325, %v923, %v938
        %v941 = vunpack.c.l.s4 1934713408
        %v942 = vunpack.c.0.s8 %v941
        %v943 = vperm.slane %v937, %v942
        %v945 = vunpack.c.l.s4 1934713408
        %v946 = vunpack.c.0.s8 %v945
        %v947 = vperm.slane %v939, %v946
        %v948 = vrot.slane %v931, 4
        %v949 = vsel %vm325, 0.0, %v948
        %v950 = vrot.slane %v935, 4
        %v951 = vsel %vm325, 0.0, %v950
        %v952 = vrot.slane %v943, 4
        %v953 = vsel %vm325, 0.0, %v952
        %v954 = vrot.slane %v947, 4
        %v955 = vsel %vm325, 0.0, %v954
        %v956 = vsel %vm325, %v950, %v931
        %v958 = vunpack.c.l.s4 1983009808
        %v959 = vunpack.c.0.s8 %v958
        %v960 = vperm.slane %v956, %v959
        %v961 = vrot.slane %v951, 4
        %v962 = vsel %vm325, %v961, %v949
        %v964 = vunpack.c.l.s4 1983009808
        %v965 = vunpack.c.0.s8 %v964
        %v966 = vperm.slane %v962, %v965
        %v967 = vsel %vm325, %v954, %v943
        %v969 = vunpack.c.l.s4 1983009808
        %v970 = vunpack.c.0.s8 %v969
        %v971 = vperm.slane %v967, %v970
        %v972 = vrot.slane %v955, 4
        %v973 = vsel %vm325, %v972, %v953
        %v975 = vunpack.c.l.s4 1983009808
        %v976 = vunpack.c.0.s8 %v975
        %v977 = vperm.slane %v973, %v976
        %v978 = vrot.slane %v966, 4
        %v979 = vsel %vm325, %v978, %v960
        %v980 = vrot.slane %v960, 4
        %v981 = vsel %vm325, %v966, %v980
        %v983 = vunpack.c.l.s4 1934713408
        %v984 = vunpack.c.0.s8 %v983
        %v985 = vperm.slane %v979, %v984
        %v987 = vunpack.c.l.s4 1934713408
        %v988 = vunpack.c.0.s8 %v987
        %v989 = vperm.slane %v981, %v988
        %v990 = vrot.slane %v977, 4
        %v991 = vsel %vm325, %v990, %v971
        %v992 = vrot.slane %v971, 4
        %v993 = vsel %vm325, %v977, %v992
        %v995 = vunpack.c.l.s4 1934713408
        %v996 = vunpack.c.0.s8 %v995
        %v997 = vperm.slane %v991, %v996
        %v999 = vunpack.c.l.s4 1934713408
        %v1000 = vunpack.c.0.s8 %v999
        %v1001 = vperm.slane %v993, %v1000
        %v1002 = vrot.slane %v997, 4
        %v1003 = vsel %vm325, %v1002, %v985
        %v1004 = vrot.slane %v985, 4
        %v1005 = vsel %vm325, %v997, %v1004
        %v1006 = vrot.slane %v1001, 4
        %v1007 = vsel %vm325, %v1006, %v989
        %v1008 = vrot.slane %v989, 4
        %v1009 = vsel %vm325, %v1001, %v1008
        %1011 = vrot.lane.b32.xlu0 %v1005, 8
        %v1012 = vpop.permute.xlu0 %1011
        %1015 = vrot.lane.b32.xlu0 %v1007, 16
        %v1016 = vpop.permute.xlu0 %1015
        %1019 = vrot.lane.b32.xlu0 %v1009, 24
        %v1020 = vpop.permute.xlu0 %1019
        %v1022 = vsel %vm698, %v1003, %v1012
        %vm1023 = vcmask 130048
        %v1024 = vsel %vm1023, %v1022, %v1016
        %vm1025 = vcmask 195584
        %v1026 = vsel %vm1025, %v1024, %v1020
        %v1027 = vpack.c.bf16 %v1026, %v1026
        %v1028 = vld [vmem:[#allocation7] sm:$0xf]
        %v1029 = vld [vmem:[#allocation7 + $0x4] sm:$0xf]
        %v1030 = vld [vmem:[#allocation7 + $0x8] sm:$0xf]
        %v1031 = vld [vmem:[#allocation7 + $0xc] sm:$0xf]
        %v1032 = vld [vmem:[%s4] sm:$0x1]
        %v1034 = vperm.slane %v1032, 0
        %v1040 = vunpack.c.l.b16 %v1028
        %v1041 = vunpack.c.l.b16 %v1029
        %v1042 = vunpack.c.l.b16 %v1030
        %v1043 = vunpack.c.l.b16 %v1031
        %v1044 = vpack.c.b16 %v1041, %v1040
        %v1045 = vpack.c.b16 %v1043, %v1042
        %v1049 = vsel %vm297, %v1027, 0
        %1051 = vmatpush.bf16.msra.mxu0 0
        %1052 = vmatpush.bf16.msra.mxu0 0
        %1053 = vmatpush.bf16.msra.mxu0 0
        %1054 = vmatpush.bf16.msra.mxu0 0
        %1055 = vmatpush.bf16.msra.mxu0 0
        %1056 = vmatpush.bf16.msra.mxu0 0
        %1057 = vmatpush.bf16.msra.mxu0 %v1045
        %1058 = vmatpush.bf16.msra.mxu0 %v1044
        %1059 = vmatmul.bf16.gmra.mxu0 %v1049
        %v1060 = vpop.f32.mrf.mxu0
        %v1061 = vadd.f32 %v1034, %v1060
        %v1062 = vpop.f32.mrf.mxu0
        %1063 = vdwg.mxu0
        %1064 = vst.msk [vmem:[%s274] sm:$0xff] %vm297, %v1061
        %s1065 = sand.u32 %s141, 1
        %s1066 = scalar_lea.sflag [#allocation4], %s1065
        %s1067 = sand.u32 %s141, 1
        %s1068 = smul.addr %s1067, 8
        %s1069 = scalar_lea.vmem [#allocation8], %s1068
        // Predicated region
        $region53: #{tpu_custom_call.1} parent=39 // pred_check
          %p1070 = pneg %p151
        $region54: #{tpu_custom_call.1} parent=39 // pred_check_branch
          %1072 = sbr.rel (%p1070) target = $region56
        $region55: #{tpu_custom_call.1} parent=39 // pred_region
          %1074 = vsyncadd %s1066, 0
          %s1075 = smul.addr %s23, 8
          %s1076 = scalar_lea.hbm %s5, %s1075
          %s1078 = sshll.u32 %s1069, 4
          %s1079 = int_to_ptr.vmem [resolvable:$true] %s1078
          %s1080 = sshll.u32 %s1076, 4
          %s1081 = int_to_ptr.hbm [resolvable:$true] %s1080
          %1083 = dma.vmem_to_hbm [thread:$0]  %s1079, 128, %s1081, %s1066
        $region56: #{tpu_custom_call.1} parent=39 // pred_fallthru
          _
      $region40: #{tpu_custom_call.1} parent=5 // pred_fallthru
        _
      %p1084 = scmp.le.s32.totalorder 2, %s18
      // Predicated region
      $region57: #{tpu_custom_call.1} parent=5 // pred_check
        %p1085 = pneg %p1084
      $region58: #{tpu_custom_call.1} parent=5 // pred_check_branch
        %1087 = sbr.rel (%p1085) target = $region60
      $region59: #{tpu_custom_call.1} parent=5 // pred_region
        %s1088 = ssub.s32 %s18, 2
        // Predicated region
        $region61: #{tpu_custom_call.1} parent=59 // pred_check
          %p1089 = pneg %p157
        $region62: #{tpu_custom_call.1} parent=59 // pred_check_branch
          %1091 = sbr.rel (%p1089) target = $region64
        $region63: #{tpu_custom_call.1} parent=59 // pred_region
          %s1092 = sand.u32 %s142, 1
          %s1093 = scalar_lea.sflag [#allocation4], %s1092
          %s1094 = sand.u32 %s142, 1
          %s1095 = smul.addr %s1094, 8
          %s1096 = scalar_lea.vmem [#allocation8], %s1095
          %1098 = dma.done %s1093, 128
        $region64: #{tpu_custom_call.1} parent=59 // pred_fallthru
          _
      $region60: #{tpu_custom_call.1} parent=5 // pred_fallthru
        _
    $region6: #{tpu_custom_call.1} parent=1 // loop_footer
      %s22 = sadd.s32 1, %s18
    $region7: #{tpu_custom_call.1} parent=1 // loop_footer_branch
      %17 = sbr.rel target = $region3
    $region8: #{tpu_custom_call.1} parent=1 // loop_exit
      _
    %1099 = vsyncpa [#allocation3], 1
    %s1100 = scalar_lea.sflag [#allocation3], 1
    %1101 = vsyncpa %s1100, 1
    %1102 = vsyncpa [#allocation6], 1
    %1103 = vsyncpa [#allocation4], 1
    %s1104 = scalar_lea.sflag [#allocation4], 1
    %1105 = vsyncpa %s1104, 1

</llo_original>
